<compile_context>
chip_gen: v7x
topology: tpu7x:2x2x1
jax: 0.10.0
libtpu: 0.0.40
codegen_flags: <defaults>
</compile_context>

<pallas_src>
import functools

import jax
import jax.numpy as jnp
from jax import lax
from jax.experimental import pallas as pl
from jax.experimental.pallas import tpu as pltpu

NEG_SLOPE = 0.01  # torch.nn.LeakyReLU default negative_slope


def _choose_pack(wc, n):
    """How many images to pack side-by-side along the lane axis."""
    for target in (256, 128):  # 256 = v6e/v7x MXU width, 128 = v5e / vreg lanes
        p = target // wc
        if 1 <= p <= n:
            return p
    return 1


def _resblock_kernel(xpad_ref, w0_ref, b0_ref, w1_ref, b1_ref, o_ref,
                     mid_ref, *, H, L):
    """One group of `pack` lane-packed images per grid step.

    xpad_ref : (1, H+2, L) f32   H-zero-padded input slab (L = pack*W*C)
    w{0,1}   : (3, L, L)   bf16  per-kh banded weights (kw folded in)
    b{0,1}   : (1, L)      f32   per-lane bias
    o_ref    : (1, H, L)   f32
    mid_ref  : (H+2, L)    f32   VMEM scratch for the H-padded intermediate
    """
    xb = xpad_ref[0].astype(jnp.bfloat16)                      # (H+2, L)

    # ---- conv0: 3 MXU matmuls (bf16 x bf16 -> f32 accumulate) --------------
    acc0 = jnp.dot(xb[0:H, :], w0_ref[0], preferred_element_type=jnp.float32)
    acc0 = acc0 + jnp.dot(xb[1:1 + H, :], w0_ref[1],
                          preferred_element_type=jnp.float32)
    acc0 = acc0 + jnp.dot(xb[2:2 + H, :], w0_ref[2],
                          preferred_element_type=jnp.float32)
    acc0 = acc0 + b0_ref[...]
    acc0 = jnp.where(acc0 >= 0.0, acc0, NEG_SLOPE * acc0)      # LeakyReLU
    mid_bf = acc0.astype(jnp.bfloat16)                         # MXU operand

    # ---- re-pad intermediate in H: zero only the two halo rows -------------
    zero_row = jnp.zeros((1, L), jnp.float32)
    mid_ref[0:1, :] = zero_row
    mid_ref[H + 1:H + 2, :] = zero_row
    mid_ref[1:1 + H, :] = acc0

    # ---- conv1: centre tap from registers, shifted taps via scratch --------
    acc1 = jnp.dot(mid_bf, w1_ref[1], preferred_element_type=jnp.float32)
    acc1 = acc1 + jnp.dot(mid_ref[0:H, :].astype(jnp.bfloat16), w1_ref[0],
                          preferred_element_type=jnp.float32)
    acc1 = acc1 + jnp.dot(mid_ref[2:2 + H, :].astype(jnp.bfloat16), w1_ref[2],
                          preferred_element_type=jnp.float32)
    acc1 = acc1 + b1_ref[...]

    # ---- residual add (f32 path, exact) ------------------------------------
    o_ref[0] = xpad_ref[0, 1:1 + H, :] + acc1


def prepare_resblock_params(w0, b0, w1, b1, *, W, pack):
    """Precompute folded/banded weights ONCE (conv weights are static across
    forward calls) — do not rebuild per forward."""
    def expand_w(w):
        # torch (C_out, C_in, kh, kw) -> (kh, kw, C_in, C_out) taps.
        wt = jnp.transpose(w.astype(jnp.float32), (2, 3, 1, 0))
        # Fold the 3 kw taps into one banded (W*C, W*C) matrix per kh:
        #   kw=0 -> super block-diagonal, kw=1 -> main, kw=2 -> sub.
        # Clipped edge blocks give the implicit zero W-padding.
        mats = []
        for kh in range(3):
            m = (jnp.kron(jnp.eye(W, k=1, dtype=jnp.float32), wt[kh, 0])
                 + jnp.kron(jnp.eye(W, k=0, dtype=jnp.float32), wt[kh, 1])
                 + jnp.kron(jnp.eye(W, k=-1, dtype=jnp.float32), wt[kh, 2]))
            mats.append(m)
        m3 = jnp.stack(mats)                                    # (3, WC, WC)
        # Extend block-diagonally over lane-packed images (zero cross-image
        # blocks -> no leakage between packed images).
        eye_p = jnp.eye(pack, dtype=jnp.float32)
        m3 = jax.vmap(lambda mk: jnp.kron(eye_p, mk))(m3)       # (3, L, L)
        return m3.astype(jnp.bfloat16)                          # bf16 MXU operand

    def expand_b(b):
        return jnp.tile(b.astype(jnp.float32), W * pack).reshape(1, -1)

    return expand_w(w0), expand_b(b0), expand_w(w1), expand_b(b1)


def resblock_pallas(x_nchw, params, *, pack):
    """ResBlock forward. x_nchw: (N, C, H, W); params from
    prepare_resblock_params (built with the same `pack`)."""
    w0_bd, b0_t, w1_bd, b1_t = params
    N, C, H, W = x_nchw.shape
    L = pack * W * C

    # Glue: NCHW -> lane-packed slabs (G, H+2, L) with zero H halos.
    n_pad = -(-N // pack) * pack
    x_nhwc = jnp.transpose(x_nchw, (0, 2, 3, 1)).astype(jnp.float32)
    if n_pad != N:
        x_nhwc = jnp.pad(x_nhwc, ((0, n_pad - N), (0, 0), (0, 0), (0, 0)))
    G = n_pad // pack
    x_slab = jnp.transpose(x_nhwc.reshape(G, pack, H, W, C),
                           (0, 2, 1, 3, 4)).reshape(G, H, L)
    x_slab = jnp.pad(x_slab, ((0, 0), (1, 1), (0, 0)))          # (G, H+2, L)

    kernel = functools.partial(_resblock_kernel, H=H, L=L)

    out_slab = pl.pallas_call(
        kernel,
        out_shape=jax.ShapeDtypeStruct((G, H, L), jnp.float32),
        grid_spec=pltpu.PrefetchScalarGridSpec(
            num_scalar_prefetch=0,
            grid=(G,),
            in_specs=[
                pl.BlockSpec((1, H + 2, L), lambda g: (g, 0, 0)),
                pl.BlockSpec((3, L, L), lambda g: (0, 0, 0)),
                pl.BlockSpec((1, L), lambda g: (0, 0)),
                pl.BlockSpec((3, L, L), lambda g: (0, 0, 0)),
                pl.BlockSpec((1, L), lambda g: (0, 0)),
            ],
            out_specs=pl.BlockSpec((1, H, L), lambda g: (g, 0, 0)),
            scratch_shapes=[pltpu.VMEM((H + 2, L), jnp.float32)],
        ),
        compiler_params=pltpu.CompilerParams(
            # Batch groups are fully independent -> shard across TensorCores.
            dimension_semantics=("parallel",),
            vmem_limit_bytes=32 * 1024 * 1024,
        ),
        # TODO(synk): at large W*C, tile W instead of expanding the full
        # block-diagonal weight, and reduce weight buffering (constants don't
        # need double-buffering).
    )(x_slab, w0_bd, b0_t, w1_bd, b1_t)

    # Glue: back to NCHW.
    out_nhwc = jnp.transpose(out_slab.reshape(G, H, pack, W, C),
                             (0, 2, 1, 3, 4)).reshape(n_pad, H, W, C)[:N]
    return jnp.transpose(out_nhwc, (0, 3, 1, 2))


def resblock_ref(x_nchw, w0, b0, w1, b1):
    """Pure-JAX f32 reference matching the PyTorch module."""
    dn = ('NCHW', 'OIHW', 'NCHW')

    def conv(x, w, b):
        y = lax.conv_general_dilated(x, w, window_strides=(1, 1),
                                     padding=((1, 1), (1, 1)),
                                     dimension_numbers=dn,
                                     precision=lax.Precision.HIGHEST)
        return y + b.reshape(1, -1, 1, 1)

    h = conv(x_nchw, w0, b0)
    h = jnp.where(h >= 0.0, h, NEG_SLOPE * h)
    return x_nchw + conv(h, w1, b1)


if __name__ == "__main__":
    N, C, H, W = 2, 4, 16, 16
    key = jax.random.PRNGKey(0)
    k1, k2, k3, k4, k5 = jax.random.split(key, 5)

    x = jax.random.normal(k1, (N, C, H, W), jnp.float32)

    # Deterministic parameter init mimicking nn.Conv2d default (uniform(-b, b)).
    fan_in = C * 3 * 3
    bound = 1.0 / (fan_in ** 0.5)
    w0 = jax.random.uniform(k2, (C, C, 3, 3), jnp.float32, -bound, bound)
    b0 = jax.random.uniform(k3, (C,), jnp.float32, -bound, bound)
    w1 = jax.random.uniform(k4, (C, C, 3, 3), jnp.float32, -bound, bound)
    b1 = jax.random.uniform(k5, (C,), jnp.float32, -bound, bound)

    pack = _choose_pack(W * C, N)          # here: 2 images -> 128-lane slabs
    params = prepare_resblock_params(w0, b0, w1, b1, W=W, pack=pack)  # once
    params = jax.block_until_ready(params)

    # Jit the whole forward so the layout glue fuses around the pallas_call.
    fwd = jax.jit(functools.partial(resblock_pallas, pack=pack))
    out = jax.block_until_ready(fwd(x, params))

    ref = resblock_ref(x, w0, b0, w1, b1)
    assert out.shape == (N, C, H, W)
    # Matmul operands are bf16 (f32 accumulate); residual path stays f32, so a
    # slightly relaxed tolerance vs the f32-HIGHEST reference is expected.
    assert jnp.allclose(out, ref, rtol=2e-2, atol=2e-2), (
        f"max abs err {jnp.max(jnp.abs(out - ref))}")

    print("KERNEL_OK")
</pallas_src>

<mosaic_0001>
module attributes {stable_mosaic.version = 11 : i64} {
  func.func @_resblock_kernel(%arg0: i32, %arg1: memref<1x18x128xf32, #tpu.memory_space<vmem>>, %arg2: memref<3x128x128xbf16, #tpu.memory_space<vmem>>, %arg3: memref<1x128xf32, #tpu.memory_space<vmem>>, %arg4: memref<3x128x128xbf16, #tpu.memory_space<vmem>>, %arg5: memref<1x128xf32, #tpu.memory_space<vmem>>, %arg6: memref<1x16x128xf32, #tpu.memory_space<vmem>>, %arg7: memref<18x128xf32, #tpu.memory_space<vmem>>) attributes {dimension_semantics = [#tpu.dimension_semantics<parallel>], iteration_bounds = array<i64: 1>, scalar_prefetch = 0 : i64, scratch_operands = 1 : i64, tpu.core_type = #tpu.core_type<tc>, window_params = [{transform_indices = @transform_0, window_bounds = array<i64: 1, 18, 128>}, {pipeline_mode = #tpu.pipeline_mode<synchronous>, transform_indices = @transform_1, window_bounds = array<i64: 3, 128, 128>}, {pipeline_mode = #tpu.pipeline_mode<synchronous>, transform_indices = @transform_2, window_bounds = array<i64: 1, 128>}, {pipeline_mode = #tpu.pipeline_mode<synchronous>, transform_indices = @transform_3, window_bounds = array<i64: 3, 128, 128>}, {pipeline_mode = #tpu.pipeline_mode<synchronous>, transform_indices = @transform_4, window_bounds = array<i64: 1, 128>}, {transform_indices = @transform_5, window_bounds = array<i64: 1, 16, 128>}]} {
    %c0 = arith.constant 0 : index
    %c0_0 = arith.constant 0 : index
    %c0_1 = arith.constant 0 : index
    %0 = vector.load %arg1[%c0, %c0_0, %c0_1] : memref<1x18x128xf32, #tpu.memory_space<vmem>>, vector<1x18x128xf32>
    %1 = vector.shape_cast %0 : vector<1x18x128xf32> to vector<18x128xf32>
    %2 = arith.truncf %1 : vector<18x128xf32> to vector<18x128xbf16>
    %3 = vector.extract_strided_slice %2 {offsets = [0, 0], sizes = [16, 128], strides = [1, 1]} : vector<18x128xbf16> to vector<16x128xbf16>
    %c0_2 = arith.constant 0 : index
    %c0_3 = arith.constant 0 : index
    %c0_4 = arith.constant 0 : index
    %4 = vector.load %arg2[%c0_2, %c0_3, %c0_4] : memref<3x128x128xbf16, #tpu.memory_space<vmem>>, vector<1x128x128xbf16>
    %5 = vector.shape_cast %4 : vector<1x128x128xbf16> to vector<128x128xbf16>
    %cst = arith.constant dense<0.000000e+00> : vector<16x128xf32>
    %6 = tpu.matmul %3, %5, %cst {dimension_numbers = #tpu.dot_dimension_numbers<[1], [0], [0], [1], [0, 0, 1, 1], [], []>} : vector<16x128xbf16>, vector<128x128xbf16>, vector<16x128xf32> -> vector<16x128xf32>
    %7 = vector.extract_strided_slice %2 {offsets = [1, 0], sizes = [16, 128], strides = [1, 1]} : vector<18x128xbf16> to vector<16x128xbf16>
    %c1 = arith.constant 1 : index
    %c0_5 = arith.constant 0 : index
    %c0_6 = arith.constant 0 : index
    %8 = vector.load %arg2[%c1, %c0_5, %c0_6] : memref<3x128x128xbf16, #tpu.memory_space<vmem>>, vector<1x128x128xbf16>
    %9 = vector.shape_cast %8 : vector<1x128x128xbf16> to vector<128x128xbf16>
    %cst_7 = arith.constant dense<0.000000e+00> : vector<16x128xf32>
    %10 = tpu.matmul %7, %9, %cst_7 {dimension_numbers = #tpu.dot_dimension_numbers<[1], [0], [0], [1], [0, 0, 1, 1], [], []>} : vector<16x128xbf16>, vector<128x128xbf16>, vector<16x128xf32> -> vector<16x128xf32>
    %11 = arith.addf %6, %10 : vector<16x128xf32>
    %12 = vector.extract_strided_slice %2 {offsets = [2, 0], sizes = [16, 128], strides = [1, 1]} : vector<18x128xbf16> to vector<16x128xbf16>
    %c2 = arith.constant 2 : index
    %c0_8 = arith.constant 0 : index
    %c0_9 = arith.constant 0 : index
    %13 = vector.load %arg2[%c2, %c0_8, %c0_9] : memref<3x128x128xbf16, #tpu.memory_space<vmem>>, vector<1x128x128xbf16>
    %14 = vector.shape_cast %13 : vector<1x128x128xbf16> to vector<128x128xbf16>
    %cst_10 = arith.constant dense<0.000000e+00> : vector<16x128xf32>
    %15 = tpu.matmul %12, %14, %cst_10 {dimension_numbers = #tpu.dot_dimension_numbers<[1], [0], [0], [1], [0, 0, 1, 1], [], []>} : vector<16x128xbf16>, vector<128x128xbf16>, vector<16x128xf32> -> vector<16x128xf32>
    %16 = arith.addf %11, %15 : vector<16x128xf32>
    %c0_11 = arith.constant 0 : index
    %c0_12 = arith.constant 0 : index
    %17 = vector.load %arg3[%c0_11, %c0_12] : memref<1x128xf32, #tpu.memory_space<vmem>>, vector<1x128xf32>
    %18 = vector.broadcast %17 : vector<1x128xf32> to vector<16x128xf32>
    %19 = arith.addf %16, %18 : vector<16x128xf32>
    %cst_13 = arith.constant 0.000000e+00 : f32
    %20 = vector.broadcast %cst_13 : f32 to vector<16x128xf32>
    %21 = arith.cmpf oge, %19, %20 : vector<16x128xf32>
    %cst_14 = arith.constant 0.00999999977 : f32
    %22 = vector.broadcast %cst_14 : f32 to vector<16x128xf32>
    %23 = arith.mulf %22, %19 : vector<16x128xf32>
    %24 = arith.select %21, %19, %23 : vector<16x128xi1>, vector<16x128xf32>
    %25 = arith.truncf %24 : vector<16x128xf32> to vector<16x128xbf16>
    %cst_15 = arith.constant 0.000000e+00 : f32
    %26 = vector.broadcast %cst_15 : f32 to vector<1x128xf32>
    %c0_16 = arith.constant 0 : index
    %c0_17 = arith.constant 0 : index
    %27 = vector.load %arg7[%c0_16, %c0_17] : memref<18x128xf32, #tpu.memory_space<vmem>>, vector<1x128xf32>
    tpu.vector_store %arg7[%c0_16, %c0_17], %26 {strides = array<i32>} : memref<18x128xf32, #tpu.memory_space<vmem>>, vector<1x128xf32>,
    %c17 = arith.constant 17 : index
    %c0_18 = arith.constant 0 : index
    %28 = vector.load %arg7[%c17, %c0_18] : memref<18x128xf32, #tpu.memory_space<vmem>>, vector<1x128xf32>
    tpu.vector_store %arg7[%c17, %c0_18], %26 {strides = array<i32>} : memref<18x128xf32, #tpu.memory_space<vmem>>, vector<1x128xf32>,
    %c1_19 = arith.constant 1 : index
    %c0_20 = arith.constant 0 : index
    %29 = vector.load %arg7[%c1_19, %c0_20] : memref<18x128xf32, #tpu.memory_space<vmem>>, vector<16x128xf32>
    tpu.vector_store %arg7[%c1_19, %c0_20], %24 {strides = array<i32>} : memref<18x128xf32, #tpu.memory_space<vmem>>, vector<16x128xf32>,
    %c1_21 = arith.constant 1 : index
    %c0_22 = arith.constant 0 : index
    %c0_23 = arith.constant 0 : index
    %30 = vector.load %arg4[%c1_21, %c0_22, %c0_23] : memref<3x128x128xbf16, #tpu.memory_space<vmem>>, vector<1x128x128xbf16>
    %31 = vector.shape_cast %30 : vector<1x128x128xbf16> to vector<128x128xbf16>
    %cst_24 = arith.constant dense<0.000000e+00> : vector<16x128xf32>
    %32 = tpu.matmul %25, %31, %cst_24 {dimension_numbers = #tpu.dot_dimension_numbers<[1], [0], [0], [1], [0, 0, 1, 1], [], []>} : vector<16x128xbf16>, vector<128x128xbf16>, vector<16x128xf32> -> vector<16x128xf32>
    %c0_25 = arith.constant 0 : index
    %c0_26 = arith.constant 0 : index
    %33 = vector.load %arg7[%c0_25, %c0_26] : memref<18x128xf32, #tpu.memory_space<vmem>>, vector<16x128xf32>
    %34 = arith.truncf %33 : vector<16x128xf32> to vector<16x128xbf16>
    %c0_27 = arith.constant 0 : index
    %c0_28 = arith.constant 0 : index
    %c0_29 = arith.constant 0 : index
    %35 = vector.load %arg4[%c0_27, %c0_28, %c0_29] : memref<3x128x128xbf16, #tpu.memory_space<vmem>>, vector<1x128x128xbf16>
    %36 = vector.shape_cast %35 : vector<1x128x128xbf16> to vector<128x128xbf16>
    %cst_30 = arith.constant dense<0.000000e+00> : vector<16x128xf32>
    %37 = tpu.matmul %34, %36, %cst_30 {dimension_numbers = #tpu.dot_dimension_numbers<[1], [0], [0], [1], [0, 0, 1, 1], [], []>} : vector<16x128xbf16>, vector<128x128xbf16>, vector<16x128xf32> -> vector<16x128xf32>
    %38 = arith.addf %32, %37 : vector<16x128xf32>
    %c2_31 = arith.constant 2 : index
    %c0_32 = arith.constant 0 : index
    %39 = vector.load %arg7[%c2_31, %c0_32] : memref<18x128xf32, #tpu.memory_space<vmem>>, vector<16x128xf32>
    %40 = arith.truncf %39 : vector<16x128xf32> to vector<16x128xbf16>
    %c2_33 = arith.constant 2 : index
    %c0_34 = arith.constant 0 : index
    %c0_35 = arith.constant 0 : index
    %41 = vector.load %arg4[%c2_33, %c0_34, %c0_35] : memref<3x128x128xbf16, #tpu.memory_space<vmem>>, vector<1x128x128xbf16>
    %42 = vector.shape_cast %41 : vector<1x128x128xbf16> to vector<128x128xbf16>
    %cst_36 = arith.constant dense<0.000000e+00> : vector<16x128xf32>
    %43 = tpu.matmul %40, %42, %cst_36 {dimension_numbers = #tpu.dot_dimension_numbers<[1], [0], [0], [1], [0, 0, 1, 1], [], []>} : vector<16x128xbf16>, vector<128x128xbf16>, vector<16x128xf32> -> vector<16x128xf32>
    %44 = arith.addf %38, %43 : vector<16x128xf32>
    %c0_37 = arith.constant 0 : index
    %c0_38 = arith.constant 0 : index
    %45 = vector.load %arg5[%c0_37, %c0_38] : memref<1x128xf32, #tpu.memory_space<vmem>>, vector<1x128xf32>
    %46 = vector.broadcast %45 : vector<1x128xf32> to vector<16x128xf32>
    %47 = arith.addf %44, %46 : vector<16x128xf32>
    %c0_39 = arith.constant 0 : index
    %c1_40 = arith.constant 1 : index
    %c0_41 = arith.constant 0 : index
    %48 = vector.load %arg1[%c0_39, %c1_40, %c0_41] : memref<1x18x128xf32, #tpu.memory_space<vmem>>, vector<1x16x128xf32>
    %49 = vector.shape_cast %48 : vector<1x16x128xf32> to vector<16x128xf32>
    %50 = arith.addf %49, %47 : vector<16x128xf32>
    %c0_42 = arith.constant 0 : index
    %c0_43 = arith.constant 0 : index
    %c0_44 = arith.constant 0 : index
    %51 = vector.load %arg6[%c0_42, %c0_43, %c0_44] : memref<1x16x128xf32, #tpu.memory_space<vmem>>, vector<1x16x128xf32>
    %52 = vector.shape_cast %51 : vector<1x16x128xf32> to vector<16x128xf32>
    %53 = vector.shape_cast %50 : vector<16x128xf32> to vector<1x16x128xf32>
    tpu.vector_store %arg6[%c0_42, %c0_43, %c0_44], %53 {strides = array<i32>} : memref<1x16x128xf32, #tpu.memory_space<vmem>>, vector<1x16x128xf32>,
    return
  }
  func.func @transform_0(%arg0: i32) -> (i32, i32, i32) {
    %c0_i32 = arith.constant 0 : i32
    %c0_i32_0 = arith.constant 0 : i32
    %c0_i32_1 = arith.constant 0 : i32
    return %arg0, %c0_i32, %c0_i32_0 : i32, i32, i32
  }
  func.func @transform_1(%arg0: i32) -> (i32, i32, i32) {
    %c0_i32 = arith.constant 0 : i32
    %c0_i32_0 = arith.constant 0 : i32
    %c0_i32_1 = arith.constant 0 : i32
    %c0_i32_2 = arith.constant 0 : i32
    return %c0_i32, %c0_i32_0, %c0_i32_1 : i32, i32, i32
  }
  func.func @transform_2(%arg0: i32) -> (i32, i32) {
    %c0_i32 = arith.constant 0 : i32
    %c0_i32_0 = arith.constant 0 : i32
    %c0_i32_1 = arith.constant 0 : i32
    return %c0_i32, %c0_i32_0 : i32, i32
  }
  func.func @transform_3(%arg0: i32) -> (i32, i32, i32) {
    %c0_i32 = arith.constant 0 : i32
    %c0_i32_0 = arith.constant 0 : i32
    %c0_i32_1 = arith.constant 0 : i32
    %c0_i32_2 = arith.constant 0 : i32
    return %c0_i32, %c0_i32_0, %c0_i32_1 : i32, i32, i32
  }
  func.func @transform_4(%arg0: i32) -> (i32, i32) {
    %c0_i32 = arith.constant 0 : i32
    %c0_i32_0 = arith.constant 0 : i32
    %c0_i32_1 = arith.constant 0 : i32
    return %c0_i32, %c0_i32_0 : i32, i32
  }
  func.func @transform_5(%arg0: i32) -> (i32, i32, i32) {
    %c0_i32 = arith.constant 0 : i32
    %c0_i32_0 = arith.constant 0 : i32
    %c0_i32_1 = arith.constant 0 : i32
    return %arg0, %c0_i32, %c0_i32_0 : i32, i32, i32
  }
}

</mosaic_0001>

<llo_original>
// kernel: resblock_pallas.1
$region0: #{resblock_pallas.1}
  #allocation0 [shape = 'u32[]', space=smem, size = 0x4, offset = 0x4, fixed_abs, tag = 'smem constant byte address 0x4 - core index']
  #allocation1 [shape = 'u32[144,128]{1,0:T(1,128)}', space=vmem, size = 0x12000, scoped, tag = 'internal scratch']
  #allocation2 [shape = 'f32[18,128]{1,0:T(8,128)}', space=vmem, size = 0x3000, scoped, tag = 'scratch operand']
  %s0 = inlined_call_operand.vmem [shape: f32[1,18,128], index: 0, kind: input, shape index: {}]
  %s1 = inlined_call_operand.vmem [shape: bf16[3,128,128], index: 1, kind: input, shape index: {}]
  %s2 = inlined_call_operand.vmem [shape: f32[1,128], index: 2, kind: input, shape index: {}]
  %s3 = inlined_call_operand.vmem [shape: bf16[3,128,128], index: 3, kind: input, shape index: {}]
  %s4 = inlined_call_operand.vmem [shape: f32[1,128], index: 4, kind: input, shape index: {}]
  %s5 = inlined_call_operand.vmem [shape: f32[1,16,128], index: 5, kind: output, shape index: {}]
  %s6 = sld [smem:[#allocation0]]
  $region30: #{resblock_pallas.1} parent=0
    _
  %s8 = ssub.s32 1, %s6
  %s9 = scalar_select 0, %s8, %s6
  // Predicated region
  $region2: #{resblock_pallas.1} parent=0 // pred_check
    _
  $region3: #{resblock_pallas.1} parent=0 // pred_check_branch
    %11 = sbr.rel (0) target = $region5
  $region4: #{resblock_pallas.1} parent=0 // pred_region
    _
  $region5: #{resblock_pallas.1} parent=0 // pred_fallthru
    _
  // Predicated region
  $region6: #{resblock_pallas.1} parent=0 // pred_check
    _
  $region7: #{resblock_pallas.1} parent=0 // pred_check_branch
    %13 = sbr.rel (0) target = $region9
  $region8: #{resblock_pallas.1} parent=0 // pred_region
    _
  $region9: #{resblock_pallas.1} parent=0 // pred_fallthru
    _
  // Predicated region
  $region10: #{resblock_pallas.1} parent=0 // pred_check
    _
  $region11: #{resblock_pallas.1} parent=0 // pred_check_branch
    %15 = sbr.rel (0) target = $region13
  $region12: #{resblock_pallas.1} parent=0 // pred_region
    _
  $region13: #{resblock_pallas.1} parent=0 // pred_fallthru
    _
  // Predicated region
  $region14: #{resblock_pallas.1} parent=0 // pred_check
    _
  $region15: #{resblock_pallas.1} parent=0 // pred_check_branch
    %17 = sbr.rel (0) target = $region17
  $region16: #{resblock_pallas.1} parent=0 // pred_region
    _
  $region17: #{resblock_pallas.1} parent=0 // pred_fallthru
    _
  // Predicated region
  $region18: #{resblock_pallas.1} parent=0 // pred_check
    _
  $region19: #{resblock_pallas.1} parent=0 // pred_check_branch
    %19 = sbr.rel (0) target = $region21
  $region20: #{resblock_pallas.1} parent=0 // pred_region
    _
  $region21: #{resblock_pallas.1} parent=0 // pred_fallthru
    _
  %v21 = vld [vmem:[%s0] sm:$0xff]
  %v22 = vld [vmem:[%s0 + $0x8] sm:$0xff]
  %v23 = vld [vmem:[%s0 + $0x10] sm:$0x3]
  %v24 = vpack.c.bf16 %v22, %v21
  %v25 = vpack.c.bf16 %v23, %v23
  %v26 = vld [vmem:[%s1] sm:$0xf]
  %v27 = vld [vmem:[%s1 + $0x4] sm:$0xf]
  %v28 = vld [vmem:[%s1 + $0x8] sm:$0xf]
  %v29 = vld [vmem:[%s1 + $0xc] sm:$0xf]
  %v30 = vld [vmem:[%s1 + $0x10] sm:$0xf]
  %v31 = vld [vmem:[%s1 + $0x14] sm:$0xf]
  %v32 = vld [vmem:[%s1 + $0x18] sm:$0xf]
  %v33 = vld [vmem:[%s1 + $0x1c] sm:$0xf]
  %v34 = vld [vmem:[%s1 + $0x20] sm:$0xf]
  %v35 = vld [vmem:[%s1 + $0x24] sm:$0xf]
  %v36 = vld [vmem:[%s1 + $0x28] sm:$0xf]
  %v37 = vld [vmem:[%s1 + $0x2c] sm:$0xf]
  %v38 = vld [vmem:[%s1 + $0x30] sm:$0xf]
  %v39 = vld [vmem:[%s1 + $0x34] sm:$0xf]
  %v40 = vld [vmem:[%s1 + $0x38] sm:$0xf]
  %v41 = vld [vmem:[%s1 + $0x3c] sm:$0xf]
  %s42 = scalar_lea.vmem %s1, 64
  %v43 = vld [vmem:[%s42] sm:$0xf]
  %v44 = vld [vmem:[%s42 + $0x4] sm:$0xf]
  %v45 = vld [vmem:[%s42 + $0x8] sm:$0xf]
  %v46 = vld [vmem:[%s42 + $0xc] sm:$0xf]
  %v47 = vld [vmem:[%s42 + $0x10] sm:$0xf]
  %v48 = vld [vmem:[%s42 + $0x14] sm:$0xf]
  %v49 = vld [vmem:[%s42 + $0x18] sm:$0xf]
  %v50 = vld [vmem:[%s42 + $0x1c] sm:$0xf]
  %v51 = vld [vmem:[%s42 + $0x20] sm:$0xf]
  %v52 = vld [vmem:[%s42 + $0x24] sm:$0xf]
  %v53 = vld [vmem:[%s42 + $0x28] sm:$0xf]
  %v54 = vld [vmem:[%s42 + $0x2c] sm:$0xf]
  %v55 = vld [vmem:[%s42 + $0x30] sm:$0xf]
  %v56 = vld [vmem:[%s42 + $0x34] sm:$0xf]
  %v57 = vld [vmem:[%s42 + $0x38] sm:$0xf]
  %v58 = vld [vmem:[%s42 + $0x3c] sm:$0xf]
  %vm59 = vsmask.f32 7424
  %v61 = vshrl.u32 %v24, 16
  %v63 = vshll.u32 %v24, 16
  %v65 = vrot.slane %v63, 1
  %v66 = vor.u32 %v61, %v65
  %v68 = vshll.u32 %v25, 16
  %v70 = vrot.slane %v68, 1
  %v71 = vsel %vm59, %v66, %v70
  %v89 = vunpack.c.l.b16 %v43
  %v90 = vunpack.c.l.b16 %v44
  %v91 = vunpack.c.l.b16 %v45
  %v92 = vunpack.c.l.b16 %v46
  %v93 = vunpack.c.l.b16 %v47
  %v94 = vunpack.c.l.b16 %v48
  %v95 = vunpack.c.l.b16 %v49
  %v96 = vunpack.c.l.b16 %v50
  %v97 = vunpack.c.l.b16 %v51
  %v98 = vunpack.c.l.b16 %v52
  %v99 = vunpack.c.l.b16 %v53
  %v100 = vunpack.c.l.b16 %v54
  %v101 = vunpack.c.l.b16 %v55
  %v102 = vunpack.c.l.b16 %v56
  %v103 = vunpack.c.l.b16 %v57
  %v104 = vunpack.c.l.b16 %v58
  %v105 = vpack.c.b16 %v90, %v89
  %v106 = vpack.c.b16 %v92, %v91
  %v107 = vpack.c.b16 %v94, %v93
  %v108 = vpack.c.b16 %v96, %v95
  %v109 = vpack.c.b16 %v98, %v97
  %v110 = vpack.c.b16 %v100, %v99
  %v111 = vpack.c.b16 %v102, %v101
  %v112 = vpack.c.b16 %v104, %v103
  %121 = vmatprep.subr.bf16.mxu0 0
  %122 = vmatpush1.bf16.msra.mxu0 %v105
  %123 = vmatprep.subr.bf16.mxu0 0
  %124 = vmatpush1.bf16.msra.mxu0 %v106
  %125 = vmatprep.subr.bf16.mxu0 0
  %126 = vmatpush1.bf16.msra.mxu0 %v107
  %127 = vmatprep.subr.bf16.mxu0 0
  %128 = vmatpush1.bf16.msra.mxu0 %v108
  %129 = vmatprep.subr.bf16.mxu0 0
  %130 = vmatpush1.bf16.msra.mxu0 %v109
  %131 = vmatprep.subr.bf16.mxu0 0
  %132 = vmatpush1.bf16.msra.mxu0 %v110
  %133 = vmatprep.subr.bf16.mxu0 0
  %134 = vmatpush1.bf16.msra.mxu0 %v111
  %135 = vmatprep.subr.bf16.mxu0 0
  %136 = vmatpush1.bf16.msra.mxu0 %v112
  %137 = vmatprep.subr.bf16.mxu0 0
  %138 = vmatpush1.bf16.msra.mxu0 0
  %139 = vmatprep.subr.bf16.mxu0 0
  %140 = vmatpush1.bf16.msra.mxu0 0
  %141 = vmatprep.subr.bf16.mxu0 0
  %142 = vmatpush1.bf16.msra.mxu0 0
  %143 = vmatprep.subr.bf16.mxu0 0
  %144 = vmatpush1.bf16.msra.mxu0 0
  %145 = vmatprep.subr.bf16.mxu0 0
  %146 = vmatpush1.bf16.msra.mxu0 0
  %147 = vmatprep.subr.bf16.mxu0 0
  %148 = vmatpush1.bf16.msra.mxu0 0
  %149 = vmatprep.subr.bf16.mxu0 0
  %150 = vmatpush1.bf16.msra.mxu0 0
  %151 = vmatprep.subr.bf16.mxu0 0
  %152 = vmatpush1.bf16.msra.mxu0 0
  %153 = vmatprep.mubr.bf16.mxu0 0
  %154 = vmatmul.mubr.bf16.gmra.mrb[0].mxu0 %v71
  %v155 = vpop.f32.mrb[0].mxu0
  %v156 = vadd.f32 0.0, %v155
  %v157 = vpop.f32.mrb[0].mxu0
  %v158 = vpop.f32.mrb[0].mxu0
  %v159 = vadd.f32 0.0, %v158
  %v160 = vpop.f32.mrb[0].mxu0
  %161 = vdwg.mxu0
  %v178 = vunpack.c.l.b16 %v26
  %v179 = vunpack.c.l.b16 %v27
  %v180 = vunpack.c.l.b16 %v28
  %v181 = vunpack.c.l.b16 %v29
  %v182 = vunpack.c.l.b16 %v30
  %v183 = vunpack.c.l.b16 %v31
  %v184 = vunpack.c.l.b16 %v32
  %v185 = vunpack.c.l.b16 %v33
  %v186 = vunpack.c.l.b16 %v34
  %v187 = vunpack.c.l.b16 %v35
  %v188 = vunpack.c.l.b16 %v36
  %v189 = vunpack.c.l.b16 %v37
  %v190 = vunpack.c.l.b16 %v38
  %v191 = vunpack.c.l.b16 %v39
  %v192 = vunpack.c.l.b16 %v40
  %v193 = vunpack.c.l.b16 %v41
  %v194 = vpack.c.b16 %v179, %v178
  %v195 = vpack.c.b16 %v181, %v180
  %v196 = vpack.c.b16 %v183, %v182
  %v197 = vpack.c.b16 %v185, %v184
  %v198 = vpack.c.b16 %v187, %v186
  %v199 = vpack.c.b16 %v189, %v188
  %v200 = vpack.c.b16 %v191, %v190
  %v201 = vpack.c.b16 %v193, %v192
  %210 = vmatprep.subr.bf16.mxu0 0
  %211 = vmatpush1.bf16.msra.mxu0 %v194
  %212 = vmatprep.subr.bf16.mxu0 0
  %213 = vmatpush1.bf16.msra.mxu0 %v195
  %214 = vmatprep.subr.bf16.mxu0 0
  %215 = vmatpush1.bf16.msra.mxu0 %v196
  %216 = vmatprep.subr.bf16.mxu0 0
  %217 = vmatpush1.bf16.msra.mxu0 %v197
  %218 = vmatprep.subr.bf16.mxu0 0
  %219 = vmatpush1.bf16.msra.mxu0 %v198
  %220 = vmatprep.subr.bf16.mxu0 0
  %221 = vmatpush1.bf16.msra.mxu0 %v199
  %222 = vmatprep.subr.bf16.mxu0 0
  %223 = vmatpush1.bf16.msra.mxu0 %v200
  %224 = vmatprep.subr.bf16.mxu0 0
  %225 = vmatpush1.bf16.msra.mxu0 %v201
  %226 = vmatprep.subr.bf16.mxu0 0
  %227 = vmatpush1.bf16.msra.mxu0 0
  %228 = vmatprep.subr.bf16.mxu0 0
  %229 = vmatpush1.bf16.msra.mxu0 0
  %230 = vmatprep.subr.bf16.mxu0 0
  %231 = vmatpush1.bf16.msra.mxu0 0
  %232 = vmatprep.subr.bf16.mxu0 0
  %233 = vmatpush1.bf16.msra.mxu0 0
  %234 = vmatprep.subr.bf16.mxu0 0
  %235 = vmatpush1.bf16.msra.mxu0 0
  %236 = vmatprep.subr.bf16.mxu0 0
  %237 = vmatpush1.bf16.msra.mxu0 0
  %238 = vmatprep.subr.bf16.mxu0 0
  %239 = vmatpush1.bf16.msra.mxu0 0
  %240 = vmatprep.subr.bf16.mxu0 0
  %241 = vmatpush1.bf16.msra.mxu0 0
  %242 = vmatprep.mubr.bf16.mxu0 0
  %243 = vmatmul.mubr.bf16.gmra.mrb[0].mxu0 %v24
  %v244 = vpop.f32.mrb[0].mxu0
  %v245 = vadd.f32 %v156, %v244
  %v246 = vpop.f32.mrb[0].mxu0
  %v247 = vpop.f32.mrb[0].mxu0
  %v248 = vadd.f32 %v159, %v247
  %v249 = vpop.f32.mrb[0].mxu0
  %250 = vdwg.mxu0
  %s251 = scalar_lea.vmem %s1, 128
  %v252 = vld [vmem:[%s251] sm:$0xf]
  %v253 = vld [vmem:[%s251 + $0x4] sm:$0xf]
  %v254 = vld [vmem:[%s251 + $0x8] sm:$0xf]
  %v255 = vld [vmem:[%s251 + $0xc] sm:$0xf]
  %v256 = vld [vmem:[%s251 + $0x10] sm:$0xf]
  %v257 = vld [vmem:[%s251 + $0x14] sm:$0xf]
  %v258 = vld [vmem:[%s251 + $0x18] sm:$0xf]
  %v259 = vld [vmem:[%s251 + $0x1c] sm:$0xf]
  %v260 = vld [vmem:[%s251 + $0x20] sm:$0xf]
  %v261 = vld [vmem:[%s251 + $0x24] sm:$0xf]
  %v262 = vld [vmem:[%s251 + $0x28] sm:$0xf]
  %v263 = vld [vmem:[%s251 + $0x2c] sm:$0xf]
  %v264 = vld [vmem:[%s251 + $0x30] sm:$0xf]
  %v265 = vld [vmem:[%s251 + $0x34] sm:$0xf]
  %v266 = vld [vmem:[%s251 + $0x38] sm:$0xf]
  %v267 = vld [vmem:[%s251 + $0x3c] sm:$0xf]
  %vm270 = vcmask 1046528
  %v271 = vrot.slane %v24, 1
  %v272 = vrot.slane %v25, 1
  %v273 = vsel %vm270, %v271, %v272
  %v291 = vunpack.c.l.b16 %v252
  %v292 = vunpack.c.l.b16 %v253
  %v293 = vunpack.c.l.b16 %v254
  %v294 = vunpack.c.l.b16 %v255
  %v295 = vunpack.c.l.b16 %v256
  %v296 = vunpack.c.l.b16 %v257
  %v297 = vunpack.c.l.b16 %v258
  %v298 = vunpack.c.l.b16 %v259
  %v299 = vunpack.c.l.b16 %v260
  %v300 = vunpack.c.l.b16 %v261
  %v301 = vunpack.c.l.b16 %v262
  %v302 = vunpack.c.l.b16 %v263
  %v303 = vunpack.c.l.b16 %v264
  %v304 = vunpack.c.l.b16 %v265
  %v305 = vunpack.c.l.b16 %v266
  %v306 = vunpack.c.l.b16 %v267
  %v307 = vpack.c.b16 %v292, %v291
  %v308 = vpack.c.b16 %v294, %v293
  %v309 = vpack.c.b16 %v296, %v295
  %v310 = vpack.c.b16 %v298, %v297
  %v311 = vpack.c.b16 %v300, %v299
  %v312 = vpack.c.b16 %v302, %v301
  %v313 = vpack.c.b16 %v304, %v303
  %v314 = vpack.c.b16 %v306, %v305
  %323 = vmatprep.subr.bf16.mxu0 0
  %324 = vmatpush1.bf16.msra.mxu0 %v307
  %325 = vmatprep.subr.bf16.mxu0 0
  %326 = vmatpush1.bf16.msra.mxu0 %v308
  %327 = vmatprep.subr.bf16.mxu0 0
  %328 = vmatpush1.bf16.msra.mxu0 %v309
  %329 = vmatprep.subr.bf16.mxu0 0
  %330 = vmatpush1.bf16.msra.mxu0 %v310
  %331 = vmatprep.subr.bf16.mxu0 0
  %332 = vmatpush1.bf16.msra.mxu0 %v311
  %333 = vmatprep.subr.bf16.mxu0 0
  %334 = vmatpush1.bf16.msra.mxu0 %v312
  %335 = vmatprep.subr.bf16.mxu0 0
  %336 = vmatpush1.bf16.msra.mxu0 %v313
  %337 = vmatprep.subr.bf16.mxu0 0
  %338 = vmatpush1.bf16.msra.mxu0 %v314
  %339 = vmatprep.subr.bf16.mxu0 0
  %340 = vmatpush1.bf16.msra.mxu0 0
  %341 = vmatprep.subr.bf16.mxu0 0
  %342 = vmatpush1.bf16.msra.mxu0 0
  %343 = vmatprep.subr.bf16.mxu0 0
  %344 = vmatpush1.bf16.msra.mxu0 0
  %345 = vmatprep.subr.bf16.mxu0 0
  %346 = vmatpush1.bf16.msra.mxu0 0
  %347 = vmatprep.subr.bf16.mxu0 0
  %348 = vmatpush1.bf16.msra.mxu0 0
  %349 = vmatprep.subr.bf16.mxu0 0
  %350 = vmatpush1.bf16.msra.mxu0 0
  %351 = vmatprep.subr.bf16.mxu0 0
  %352 = vmatpush1.bf16.msra.mxu0 0
  %353 = vmatprep.subr.bf16.mxu0 0
  %354 = vmatpush1.bf16.msra.mxu0 0
  %355 = vmatprep.mubr.bf16.mxu0 0
  %356 = vmatmul.mubr.bf16.gmra.mrb[0].mxu0 %v273
  %v357 = vpop.f32.mrb[0].mxu0
  %v358 = vadd.f32 0.0, %v357
  %v359 = vpop.f32.mrb[0].mxu0
  %v360 = vpop.f32.mrb[0].mxu0
  %v361 = vadd.f32 0.0, %v360
  %v362 = vpop.f32.mrb[0].mxu0
  %363 = vdwg.mxu0
  %v364 = vadd.f32 %v245, %v358
  %v365 = vadd.f32 %v248, %v361
  %v366 = vld [vmem:[%s2] sm:$0x1]
  %v368 = vlaneseq
  %v369 = vshrl.u32 %v368, 7
  %v370 = vsub.s32 0, %v369
  %v371 = vrot.slane %v366, %v370
  %v373 = vadd.f32 %v364, %v371
  %v374 = vadd.f32 %v365, %v371
  %vm375 = vcmp.ge.f32.partialorder %v373, 0.0
  %vm376 = vcmp.ge.f32.partialorder %v374, 0.0
  %v377 = vmul.f32 %v373, 0.01
  %v378 = vmul.f32 %v374, 0.01
  %v379 = vsel %vm375, %v373, %v377
  %v380 = vsel %vm376, %v374, %v378
  %v381 = vpack.c.bf16 %v380, %v379
  %382 = vst [vmem:[#allocation2] sm:$0x1] 0.0
  %383 = vst [vmem:[#allocation2 + $0x11] sm:$0x1] 0.0
  %384 = vst [vmem:[#allocation2 + $0x1] sm:$0xff] %v379
  %385 = vst [vmem:[#allocation2 + $0x9] sm:$0xff] %v380
  %s386 = scalar_lea.vmem %s3, 64
  %v387 = vld [vmem:[%s386] sm:$0xf]
  %v388 = vld [vmem:[%s386 + $0x4] sm:$0xf]
  %v389 = vld [vmem:[%s386 + $0x8] sm:$0xf]
  %v390 = vld [vmem:[%s386 + $0xc] sm:$0xf]
  %v391 = vld [vmem:[%s386 + $0x10] sm:$0xf]
  %v392 = vld [vmem:[%s386 + $0x14] sm:$0xf]
  %v393 = vld [vmem:[%s386 + $0x18] sm:$0xf]
  %v394 = vld [vmem:[%s386 + $0x1c] sm:$0xf]
  %v395 = vld [vmem:[%s386 + $0x20] sm:$0xf]
  %v396 = vld [vmem:[%s386 + $0x24] sm:$0xf]
  %v397 = vld [vmem:[%s386 + $0x28] sm:$0xf]
  %v398 = vld [vmem:[%s386 + $0x2c] sm:$0xf]
  %v399 = vld [vmem:[%s386 + $0x30] sm:$0xf]
  %v400 = vld [vmem:[%s386 + $0x34] sm:$0xf]
  %v401 = vld [vmem:[%s386 + $0x38] sm:$0xf]
  %v402 = vld [vmem:[%s386 + $0x3c] sm:$0xf]
  %v403 = vld [vmem:[#allocation2] sm:$0xff]
  %v404 = vld [vmem:[#allocation2 + $0x8] sm:$0xff]
  %v405 = vpack.c.bf16 %v404, %v403
  %v406 = vld [vmem:[%s3] sm:$0xf]
  %v407 = vld [vmem:[%s3 + $0x4] sm:$0xf]
  %v408 = vld [vmem:[%s3 + $0x8] sm:$0xf]
  %v409 = vld [vmem:[%s3 + $0xc] sm:$0xf]
  %v410 = vld [vmem:[%s3 + $0x10] sm:$0xf]
  %v411 = vld [vmem:[%s3 + $0x14] sm:$0xf]
  %v412 = vld [vmem:[%s3 + $0x18] sm:$0xf]
  %v413 = vld [vmem:[%s3 + $0x1c] sm:$0xf]
  %v414 = vld [vmem:[%s3 + $0x20] sm:$0xf]
  %v415 = vld [vmem:[%s3 + $0x24] sm:$0xf]
  %v416 = vld [vmem:[%s3 + $0x28] sm:$0xf]
  %v417 = vld [vmem:[%s3 + $0x2c] sm:$0xf]
  %v418 = vld [vmem:[%s3 + $0x30] sm:$0xf]
  %v419 = vld [vmem:[%s3 + $0x34] sm:$0xf]
  %v420 = vld [vmem:[%s3 + $0x38] sm:$0xf]
  %v421 = vld [vmem:[%s3 + $0x3c] sm:$0xf]
  %v438 = vunpack.c.l.b16 %v406
  %v439 = vunpack.c.l.b16 %v407
  %v440 = vunpack.c.l.b16 %v408
  %v441 = vunpack.c.l.b16 %v409
  %v442 = vunpack.c.l.b16 %v410
  %v443 = vunpack.c.l.b16 %v411
  %v444 = vunpack.c.l.b16 %v412
  %v445 = vunpack.c.l.b16 %v413
  %v446 = vunpack.c.l.b16 %v414
  %v447 = vunpack.c.l.b16 %v415
  %v448 = vunpack.c.l.b16 %v416
  %v449 = vunpack.c.l.b16 %v417
  %v450 = vunpack.c.l.b16 %v418
  %v451 = vunpack.c.l.b16 %v419
  %v452 = vunpack.c.l.b16 %v420
  %v453 = vunpack.c.l.b16 %v421
  %v454 = vpack.c.b16 %v439, %v438
  %v455 = vpack.c.b16 %v441, %v440
  %v456 = vpack.c.b16 %v443, %v442
  %v457 = vpack.c.b16 %v445, %v444
  %v458 = vpack.c.b16 %v447, %v446
  %v459 = vpack.c.b16 %v449, %v448
  %v460 = vpack.c.b16 %v451, %v450
  %v461 = vpack.c.b16 %v453, %v452
  %470 = vmatprep.subr.bf16.mxu0 0
  %471 = vmatpush1.bf16.msra.mxu0 %v454
  %472 = vmatprep.subr.bf16.mxu0 0
  %473 = vmatpush1.bf16.msra.mxu0 %v455
  %474 = vmatprep.subr.bf16.mxu0 0
  %475 = vmatpush1.bf16.msra.mxu0 %v456
  %476 = vmatprep.subr.bf16.mxu0 0
  %477 = vmatpush1.bf16.msra.mxu0 %v457
  %478 = vmatprep.subr.bf16.mxu0 0
  %479 = vmatpush1.bf16.msra.mxu0 %v458
  %480 = vmatprep.subr.bf16.mxu0 0
  %481 = vmatpush1.bf16.msra.mxu0 %v459
  %482 = vmatprep.subr.bf16.mxu0 0
  %483 = vmatpush1.bf16.msra.mxu0 %v460
  %484 = vmatprep.subr.bf16.mxu0 0
  %485 = vmatpush1.bf16.msra.mxu0 %v461
  %486 = vmatprep.subr.bf16.mxu0 0
  %487 = vmatpush1.bf16.msra.mxu0 0
  %488 = vmatprep.subr.bf16.mxu0 0
  %489 = vmatpush1.bf16.msra.mxu0 0
  %490 = vmatprep.subr.bf16.mxu0 0
  %491 = vmatpush1.bf16.msra.mxu0 0
  %492 = vmatprep.subr.bf16.mxu0 0
  %493 = vmatpush1.bf16.msra.mxu0 0
  %494 = vmatprep.subr.bf16.mxu0 0
  %495 = vmatpush1.bf16.msra.mxu0 0
  %496 = vmatprep.subr.bf16.mxu0 0
  %497 = vmatpush1.bf16.msra.mxu0 0
  %498 = vmatprep.subr.bf16.mxu0 0
  %499 = vmatpush1.bf16.msra.mxu0 0
  %500 = vmatprep.subr.bf16.mxu0 0
  %501 = vmatpush1.bf16.msra.mxu0 0
  %502 = vmatprep.mubr.bf16.mxu0 0
  %503 = vmatmul.mubr.bf16.gmra.mrb[0].mxu0 %v405
  %v504 = vpop.f32.mrb[0].mxu0
  %v505 = vadd.f32 0.0, %v504
  %v506 = vpop.f32.mrb[0].mxu0
  %v507 = vpop.f32.mrb[0].mxu0
  %v508 = vadd.f32 0.0, %v507
  %v509 = vpop.f32.mrb[0].mxu0
  %510 = vdwg.mxu0
  %v527 = vunpack.c.l.b16 %v387
  %v528 = vunpack.c.l.b16 %v388
  %v529 = vunpack.c.l.b16 %v389
  %v530 = vunpack.c.l.b16 %v390
  %v531 = vunpack.c.l.b16 %v391
  %v532 = vunpack.c.l.b16 %v392
  %v533 = vunpack.c.l.b16 %v393
  %v534 = vunpack.c.l.b16 %v394
  %v535 = vunpack.c.l.b16 %v395
  %v536 = vunpack.c.l.b16 %v396
  %v537 = vunpack.c.l.b16 %v397
  %v538 = vunpack.c.l.b16 %v398
  %v539 = vunpack.c.l.b16 %v399
  %v540 = vunpack.c.l.b16 %v400
  %v541 = vunpack.c.l.b16 %v401
  %v542 = vunpack.c.l.b16 %v402
  %v543 = vpack.c.b16 %v528, %v527
  %v544 = vpack.c.b16 %v530, %v529
  %v545 = vpack.c.b16 %v532, %v531
  %v546 = vpack.c.b16 %v534, %v533
  %v547 = vpack.c.b16 %v536, %v535
  %v548 = vpack.c.b16 %v538, %v537
  %v549 = vpack.c.b16 %v540, %v539
  %v550 = vpack.c.b16 %v542, %v541
  %559 = vmatprep.subr.bf16.mxu0 0
  %560 = vmatpush1.bf16.msra.mxu0 %v543
  %561 = vmatprep.subr.bf16.mxu0 0
  %562 = vmatpush1.bf16.msra.mxu0 %v544
  %563 = vmatprep.subr.bf16.mxu0 0
  %564 = vmatpush1.bf16.msra.mxu0 %v545
  %565 = vmatprep.subr.bf16.mxu0 0
  %566 = vmatpush1.bf16.msra.mxu0 %v546
  %567 = vmatprep.subr.bf16.mxu0 0
  %568 = vmatpush1.bf16.msra.mxu0 %v547
  %569 = vmatprep.subr.bf16.mxu0 0
  %570 = vmatpush1.bf16.msra.mxu0 %v548
  %571 = vmatprep.subr.bf16.mxu0 0
  %572 = vmatpush1.bf16.msra.mxu0 %v549
  %573 = vmatprep.subr.bf16.mxu0 0
  %574 = vmatpush1.bf16.msra.mxu0 %v550
  %575 = vmatprep.subr.bf16.mxu0 0
  %576 = vmatpush1.bf16.msra.mxu0 0
  %577 = vmatprep.subr.bf16.mxu0 0
  %578 = vmatpush1.bf16.msra.mxu0 0
  %579 = vmatprep.subr.bf16.mxu0 0
  %580 = vmatpush1.bf16.msra.mxu0 0
  %581 = vmatprep.subr.bf16.mxu0 0
  %582 = vmatpush1.bf16.msra.mxu0 0
  %583 = vmatprep.subr.bf16.mxu0 0
  %584 = vmatpush1.bf16.msra.mxu0 0
  %585 = vmatprep.subr.bf16.mxu0 0
  %586 = vmatpush1.bf16.msra.mxu0 0
  %587 = vmatprep.subr.bf16.mxu0 0
  %588 = vmatpush1.bf16.msra.mxu0 0
  %589 = vmatprep.subr.bf16.mxu0 0
  %590 = vmatpush1.bf16.msra.mxu0 0
  %591 = vmatprep.mubr.bf16.mxu0 0
  %592 = vmatmul.mubr.bf16.gmra.mrb[0].mxu0 %v381
  %v593 = vpop.f32.mrb[0].mxu0
  %v594 = vadd.f32 %v505, %v593
  %v595 = vpop.f32.mrb[0].mxu0
  %v596 = vpop.f32.mrb[0].mxu0
  %v597 = vadd.f32 %v508, %v596
  %v598 = vpop.f32.mrb[0].mxu0
  %599 = vdwg.mxu0
  %v600 = vld [vmem:[#allocation2 + $0x2] sm:$0xff]
  %v601 = vld [vmem:[#allocation2 + $0xa] sm:$0xff]
  %v602 = vpack.c.bf16 %v601, %v600
  %s603 = scalar_lea.vmem %s3, 128
  %v604 = vld [vmem:[%s603] sm:$0xf]
  %v605 = vld [vmem:[%s603 + $0x4] sm:$0xf]
  %v606 = vld [vmem:[%s603 + $0x8] sm:$0xf]
  %v607 = vld [vmem:[%s603 + $0xc] sm:$0xf]
  %v608 = vld [vmem:[%s603 + $0x10] sm:$0xf]
  %v609 = vld [vmem:[%s603 + $0x14] sm:$0xf]
  %v610 = vld [vmem:[%s603 + $0x18] sm:$0xf]
  %v611 = vld [vmem:[%s603 + $0x1c] sm:$0xf]
  %v612 = vld [vmem:[%s603 + $0x20] sm:$0xf]
  %v613 = vld [vmem:[%s603 + $0x24] sm:$0xf]
  %v614 = vld [vmem:[%s603 + $0x28] sm:$0xf]
  %v615 = vld [vmem:[%s603 + $0x2c] sm:$0xf]
  %v616 = vld [vmem:[%s603 + $0x30] sm:$0xf]
  %v617 = vld [vmem:[%s603 + $0x34] sm:$0xf]
  %v618 = vld [vmem:[%s603 + $0x38] sm:$0xf]
  %v619 = vld [vmem:[%s603 + $0x3c] sm:$0xf]
  %v636 = vunpack.c.l.b16 %v604
  %v637 = vunpack.c.l.b16 %v605
  %v638 = vunpack.c.l.b16 %v606
  %v639 = vunpack.c.l.b16 %v607
  %v640 = vunpack.c.l.b16 %v608
  %v641 = vunpack.c.l.b16 %v609
  %v642 = vunpack.c.l.b16 %v610
  %v643 = vunpack.c.l.b16 %v611
  %v644 = vunpack.c.l.b16 %v612
  %v645 = vunpack.c.l.b16 %v613
  %v646 = vunpack.c.l.b16 %v614
  %v647 = vunpack.c.l.b16 %v615
  %v648 = vunpack.c.l.b16 %v616
  %v649 = vunpack.c.l.b16 %v617
  %v650 = vunpack.c.l.b16 %v618
  %v651 = vunpack.c.l.b16 %v619
  %v652 = vpack.c.b16 %v637, %v636
  %v653 = vpack.c.b16 %v639, %v638
  %v654 = vpack.c.b16 %v641, %v640
  %v655 = vpack.c.b16 %v643, %v642
  %v656 = vpack.c.b16 %v645, %v644
  %v657 = vpack.c.b16 %v647, %v646
  %v658 = vpack.c.b16 %v649, %v648
  %v659 = vpack.c.b16 %v651, %v650
  %668 = vmatprep.subr.bf16.mxu0 0
  %669 = vmatpush1.bf16.msra.mxu0 %v652
  %670 = vmatprep.subr.bf16.mxu0 0
  %671 = vmatpush1.bf16.msra.mxu0 %v653
  %672 = vmatprep.subr.bf16.mxu0 0
  %673 = vmatpush1.bf16.msra.mxu0 %v654
  %674 = vmatprep.subr.bf16.mxu0 0
  %675 = vmatpush1.bf16.msra.mxu0 %v655
  %676 = vmatprep.subr.bf16.mxu0 0
  %677 = vmatpush1.bf16.msra.mxu0 %v656
  %678 = vmatprep.subr.bf16.mxu0 0
  %679 = vmatpush1.bf16.msra.mxu0 %v657
  %680 = vmatprep.subr.bf16.mxu0 0
  %681 = vmatpush1.bf16.msra.mxu0 %v658
  %682 = vmatprep.subr.bf16.mxu0 0
  %683 = vmatpush1.bf16.msra.mxu0 %v659
  %684 = vmatprep.subr.bf16.mxu0 0
  %685 = vmatpush1.bf16.msra.mxu0 0
  %686 = vmatprep.subr.bf16.mxu0 0
  %687 = vmatpush1.bf16.msra.mxu0 0
  %688 = vmatprep.subr.bf16.mxu0 0
  %689 = vmatpush1.bf16.msra.mxu0 0
  %690 = vmatprep.subr.bf16.mxu0 0
  %691 = vmatpush1.bf16.msra.mxu0 0
  %692 = vmatprep.subr.bf16.mxu0 0
  %693 = vmatpush1.bf16.msra.mxu0 0
  %694 = vmatprep.subr.bf16.mxu0 0
  %695 = vmatpush1.bf16.msra.mxu0 0
  %696 = vmatprep.subr.bf16.mxu0 0
  %697 = vmatpush1.bf16.msra.mxu0 0
  %698 = vmatprep.subr.bf16.mxu0 0
  %699 = vmatpush1.bf16.msra.mxu0 0
  %700 = vmatprep.mubr.bf16.mxu0 0
  %701 = vmatmul.mubr.bf16.gmra.mrb[0].mxu0 %v602
  %v702 = vpop.f32.mrb[0].mxu0
  %v703 = vadd.f32 0.0, %v702
  %v704 = vpop.f32.mrb[0].mxu0
  %v705 = vpop.f32.mrb[0].mxu0
  %v706 = vadd.f32 0.0, %v705
  %v707 = vpop.f32.mrb[0].mxu0
  %708 = vdwg.mxu0
  %v709 = vadd.f32 %v594, %v703
  %v710 = vadd.f32 %v597, %v706
  %v711 = vld [vmem:[%s4] sm:$0x1]
  %v713 = vlaneseq
  %v714 = vshrl.u32 %v713, 7
  %v715 = vsub.s32 0, %v714
  %v716 = vrot.slane %v711, %v715
  %v718 = vadd.f32 %v709, %v716
  %v719 = vadd.f32 %v710, %v716
  %v720 = vld [vmem:[%s0 + $0x1] sm:$0xff]
  %v721 = vld [vmem:[%s0 + $0x9] sm:$0xff]
  %v722 = vadd.f32 %v720, %v718
  %v723 = vadd.f32 %v721, %v719
  %724 = vst [vmem:[%s5] sm:$0xff] %v722
  %725 = vst [vmem:[%s5 + $0x8] sm:$0xff] %v723
  // Predicated region
  $region22: #{resblock_pallas.1} parent=0 // pred_check
    _
  $region23: #{resblock_pallas.1} parent=0 // pred_check_branch
    %727 = sbr.rel (0) target = $region25
  $region24: #{resblock_pallas.1} parent=0 // pred_region
    _
  $region25: #{resblock_pallas.1} parent=0 // pred_fallthru
    _
  // Predicated region
  $region26: #{resblock_pallas.1} parent=0 // pred_check
    _
  $region27: #{resblock_pallas.1} parent=0 // pred_check_branch
    %729 = sbr.rel (0) target = $region29
  $region28: #{resblock_pallas.1} parent=0 // pred_region
    _
  $region29: #{resblock_pallas.1} parent=0 // pred_fallthru
    _

</llo_original>
